<compile_context>
chip_gen: v6e
topology: v6e:2x2x1
jax: 0.10.0
libtpu: 0.0.40
codegen_flags: <defaults>
</compile_context>

<pallas_src>
import functools
import math

import jax
import jax.numpy as jnp
from jax.experimental import pallas as pl
from jax.experimental.pallas import tpu as pltpu


_LANE_CANDIDATES = (1024, 512, 256, 128)
_FUSED_MAX_BYTES = 4 * 1024 * 1024      # slab size below which both passes fuse
_PASS1_BLOCK_BYTES = 8 * 1024 * 1024    # ~2M elements per reduction tile
_PASS2_BLOCK_BYTES = 4 * 1024 * 1024    # ~1M elements per subtract tile


def _vmem_limit_bytes():
    """Scoped-VMEM budget per generation: ~48 MiB on v7x (64 MiB physical),
    ~96 MiB on v5e/v6e (128 MiB physical)."""
    cap = 64 * 1024 * 1024
    try:
        cap = int(pltpu.get_tpu_info().vmem_capacity_bytes)
    except Exception:
        pass
    return max(48 * 1024 * 1024, min(cap * 3 // 4, 100 * 1024 * 1024))


# ------------------------------- kernels -------------------------------------

def _fused_kernel(x_ref, o_ref, *, n_true):
    """Single-block path: sum + subtract from one VMEM-resident copy of X."""
    x = x_ref[...].astype(jnp.float32)
    mean = jnp.sum(x) / jnp.float32(n_true)
    o_ref[...] = (x - mean).astype(o_ref.dtype)


def _partial_sum_kernel(x_ref, ps_ref, *, rows_valid, tile_rows, mask_tail):
    """Per-tile partial sum written to element [0,0] of this tile's (8,128)
    output block. All grid steps are independent ('parallel', megacore-able)."""
    i = pl.program_id(0)
    x = x_ref[...].astype(jnp.float32)
    if mask_tail:
        # Last tile may extend past the array: zero out rows >= rows_valid
        # (their VMEM contents are undefined / stale).
        row_ids = i * tile_rows + jax.lax.broadcasted_iota(jnp.int32, x.shape, 0)
        x = jnp.where(row_ids < rows_valid, x, 0.0)
    partial = jnp.sum(x)
    r = jax.lax.broadcasted_iota(jnp.int32, ps_ref.shape, 0)
    c = jax.lax.broadcasted_iota(jnp.int32, ps_ref.shape, 1)
    ps_ref[...] = jnp.where((r == 0) & (c == 0), partial, 0.0)


def _subtract_kernel(mean_ref, x_ref, o_ref):
    """Streamed o = x - mean; mean is a (1,1) f32 scalar living in SMEM."""
    mean = mean_ref[0, 0]
    o_ref[...] = (x_ref[...].astype(jnp.float32) - mean).astype(o_ref.dtype)


# ------------------------------- wrapper --------------------------------------

def centered_layer(x, *, block_bytes=None, force_two_pass=False):
    """X - X.mean() over every element (PyTorch CenteredLayer.forward)."""
    orig_shape = x.shape
    dtype = x.dtype
    itemsize = jnp.dtype(dtype).itemsize
    elem_bytes = max(4, itemsize)           # size tiles by f32 compute width
    total = math.prod(orig_shape)

    # ---- lane-dense 2D slab; prefer a lane width that divides the element
    # count so the common case needs no padding copy at all -------------------
    lane = None
    for cand in _LANE_CANDIDATES:
        if total >= cand and total % cand == 0:
            lane = cand
            break
    if lane is None:
        lane = 1024 if total >= 1024 else 128
    rows = pl.cdiv(total, lane)
    pad = rows * lane - total

    flat = x.reshape(-1)
    if pad:
        # only when total is not a multiple of 128; zeros do not perturb the
        # sum (we divide by the true element count)
        flat = jnp.concatenate([flat, jnp.zeros((pad,), dtype=dtype)])
    slab = flat.reshape(rows, lane)

    vmem_limit = _vmem_limit_bytes()
    slab_bytes = rows * lane * itemsize

    # ---- fused single pass: 2N HBM traffic, one launch ----------------------
    if slab_bytes <= _FUSED_MAX_BYTES and not force_two_pass:
        out = pl.pallas_call(
            functools.partial(_fused_kernel, n_true=total),
            out_shape=jax.ShapeDtypeStruct((rows, lane), dtype),
            grid=(1,),
            in_specs=[pl.BlockSpec((rows, lane), lambda i: (0, 0))],
            out_specs=pl.BlockSpec((rows, lane), lambda i: (0, 0)),
            compiler_params=pltpu.CompilerParams(vmem_limit_bytes=vmem_limit),
        )(slab)
        out_flat = out.reshape(-1)
        if pad:
            out_flat = out_flat[:total]
        return out_flat.reshape(orig_shape)

    # ---- streaming two-pass path --------------------------------------------
    p1_bytes = block_bytes if block_bytes is not None else _PASS1_BLOCK_BYTES
    p2_bytes = (block_bytes // 2) if block_bytes is not None else _PASS2_BLOCK_BYTES

    def pick_tile(target_bytes):
        t = (target_bytes // (lane * elem_bytes)) // 8 * 8
        t = max(8, t)
        if t >= rows:
            return rows          # single full-extent block (always legal)
        return t                 # multiple of 8 -> legal sub-block

    # pass 1: per-tile partial sums, fully parallel grid
    tile1 = pick_tile(p1_bytes)
    grid1 = pl.cdiv(rows, tile1)
    mask_tail = (rows % tile1) != 0

    partials = pl.pallas_call(
        functools.partial(_partial_sum_kernel, rows_valid=rows,
                          tile_rows=tile1, mask_tail=mask_tail),
        out_shape=jax.ShapeDtypeStruct((grid1 * 8, 128), jnp.float32),
        grid=(grid1,),
        in_specs=[pl.BlockSpec((tile1, lane), lambda i: (i, 0))],
        out_specs=pl.BlockSpec((8, 128), lambda i: (i, 0)),
        compiler_params=pltpu.CompilerParams(
            dimension_semantics=("parallel",),
            vmem_limit_bytes=vmem_limit),
    )(slab)

    # tree-combine the per-tile partials (better precision than a single serial
    # f32 accumulator) and divide by the true element count
    mean = (jnp.sum(partials) / jnp.float32(total)).reshape(1, 1)

    # pass 2: tiled streaming subtract; mean read once per tile from SMEM
    tile2 = pick_tile(p2_bytes)
    grid2 = pl.cdiv(rows, tile2)
    alias = {1: 0} if pad else {}   # padded slab is a throwaway copy -> reuse it

    out = pl.pallas_call(
        _subtract_kernel,
        out_shape=jax.ShapeDtypeStruct((rows, lane), dtype),
        grid=(grid2,),
        in_specs=[
            pl.BlockSpec(memory_space=pltpu.MemorySpace.SMEM),   # (1,1) mean
            pl.BlockSpec((tile2, lane), lambda i: (i, 0)),       # x tile
        ],
        out_specs=pl.BlockSpec((tile2, lane), lambda i: (i, 0)),
        input_output_aliases=alias,
        compiler_params=pltpu.CompilerParams(
            dimension_semantics=("parallel",),
            vmem_limit_bytes=vmem_limit),
    )(mean, slab)

    out_flat = out.reshape(-1)
    if pad:
        out_flat = out_flat[:total]
    return out_flat.reshape(orig_shape)


if __name__ == "__main__":
    key = jax.random.PRNGKey(0)

    # small NCHW input: batch=2, C=4, H=W=16  (fused single-pass path)
    x = jax.random.normal(key, (2, 4, 16, 16), dtype=jnp.float32)
    y = centered_layer(x)
    jax.block_until_ready(y)
    ref = x - jnp.mean(x)
    assert y.shape == x.shape
    assert y.dtype == x.dtype
    assert jnp.allclose(y, ref, atol=1e-5, rtol=1e-5)
    assert abs(float(jnp.mean(y))) < 1e-5

    # element count not a multiple of 128 (padding path, still fused)
    x2 = jax.random.normal(jax.random.PRNGKey(1), (3, 5, 7), dtype=jnp.float32)
    y2 = centered_layer(x2)
    jax.block_until_ready(y2)
    assert y2.shape == x2.shape
    assert jnp.allclose(y2, x2 - jnp.mean(x2), atol=1e-5, rtol=1e-5)

    # force the streaming two-pass path with partial edge tiles in both passes
    x3 = jax.random.normal(jax.random.PRNGKey(2), (42, 1000), dtype=jnp.float32)
    y3 = centered_layer(x3, block_bytes=64 * 1024, force_two_pass=True)
    jax.block_until_ready(y3)
    assert y3.shape == x3.shape
    assert jnp.allclose(y3, x3 - jnp.mean(x3), atol=1e-5, rtol=1e-5)

    print("KERNEL_OK")
</pallas_src>

<mosaic_0001>
module attributes {stable_mosaic.version = 11 : i64} {
  func.func @_fused_kernel(%arg0: i32, %arg1: memref<2x1024xf32, #tpu.memory_space<vmem>>, %arg2: memref<2x1024xf32, #tpu.memory_space<vmem>>) attributes {dimension_semantics = [#tpu.dimension_semantics<arbitrary>], iteration_bounds = array<i64: 1>, scalar_prefetch = 0 : i64, scratch_operands = 0 : i64, tpu.core_type = #tpu.core_type<tc>, window_params = [{pipeline_mode = #tpu.pipeline_mode<synchronous>, transform_indices = @transform_0, window_bounds = array<i64: 2, 1024>}, {pipeline_mode = #tpu.pipeline_mode<synchronous>, transform_indices = @transform_1, window_bounds = array<i64: 2, 1024>}]} {
    %c0 = arith.constant 0 : index
    %c0_0 = arith.constant 0 : index
    %0 = vector.load %arg1[%c0, %c0_0] : memref<2x1024xf32, #tpu.memory_space<vmem>>, vector<2x1024xf32>
    %1 = vector.shape_cast %0 : vector<2x1024xf32> to vector<1x2x1024xf32>
    %cst = arith.constant dense<0.000000e+00> : vector<1xf32>
    %2 = vector.multi_reduction <add>, %1, %cst [1, 2] : vector<1x2x1024xf32> to vector<1xf32>
    %3 = vector.shape_cast %2 : vector<1xf32> to vector<1x1x1xf32>
    %4 = vector.extract %3[0, 0, 0] : f32 from vector<1x1x1xf32>
    %cst_1 = arith.constant 2.048000e+03 : f32
    %5 = arith.divf %4, %cst_1 : f32
    %6 = vector.broadcast %5 : f32 to vector<2x1024xf32>
    %7 = arith.subf %0, %6 : vector<2x1024xf32>
    %c0_2 = arith.constant 0 : index
    %c0_3 = arith.constant 0 : index
    %8 = vector.load %arg2[%c0_2, %c0_3] : memref<2x1024xf32, #tpu.memory_space<vmem>>, vector<2x1024xf32>
    tpu.vector_store %arg2[%c0_2, %c0_3], %7 {strides = array<i32>} : memref<2x1024xf32, #tpu.memory_space<vmem>>, vector<2x1024xf32>,
    return
  }
  func.func @transform_0(%arg0: i32) -> (i32, i32) {
    %c0_i32 = arith.constant 0 : i32
    %c0_i32_0 = arith.constant 0 : i32
    %c0_i32_1 = arith.constant 0 : i32
    return %c0_i32, %c0_i32_0 : i32, i32
  }
  func.func @transform_1(%arg0: i32) -> (i32, i32) {
    %c0_i32 = arith.constant 0 : i32
    %c0_i32_0 = arith.constant 0 : i32
    %c0_i32_1 = arith.constant 0 : i32
    return %c0_i32, %c0_i32_0 : i32, i32
  }
}

</mosaic_0001>

<llo_original>
// kernel: tpu_custom_call.1
$region0: #{tpu_custom_call.1}
  #allocation0 [shape = 'u32[]', space=smem, size = 0x4, offset = 0x4, fixed_abs, tag = 'smem constant byte address 0x4 - core index']
  #allocation1 [shape = 'u32[144,128]{1,0:T(1,128)}', space=vmem, size = 0x12000, scoped, tag = 'internal scratch']
  %s0 = inlined_call_operand.hbm [shape: f32[2,1024], index: 0, kind: input, shape index: {}]
  %s1 = inlined_call_operand.hbm [shape: f32[2,1024], index: 1, kind: output, shape index: {}]
  %s2 = sld [smem:[#allocation0]]
  $region18: #{tpu_custom_call.1} parent=0
    _
  %s4 = ssub.s32 1, %s2
  %s5 = scalar_select 0, %s4, %s2
  $region1: #{tpu_custom_call.1} parent=0
    #allocation2 [shape = 'u8[8192]{0}', space=vmem, size = 0x2000, scoped, tag = 'input window, operand 0, single buffered']
    #allocation3 [shape = 's32[1]{0}', space=sflag, size = 0x4, scoped, tag = 'scoped memory for tpu_custom_call.1']
    #allocation4 [shape = 's32[1]{0}', space=sflag, size = 0x4, scoped, tag = 'scoped memory for tpu_custom_call.1']
    #allocation5 [shape = 'u8[8192]{0}', space=vmem, size = 0x2000, scoped, tag = 'output window, operand 0, single buffered']
    %6 = vsyncpa [#allocation3], 0
    %7 = vsyncpa [#allocation4], 0
    // Predicated region
    $region2: #{tpu_custom_call.1} parent=1 // pred_check
      _
    $region3: #{tpu_custom_call.1} parent=1 // pred_check_branch
      %9 = sbr.rel (0) target = $region5
    $region4: #{tpu_custom_call.1} parent=1 // pred_region
      %s11 = ssub.s32 256, 256
      %12 = vsyncadd [#allocation3], %s11
      %s14 = sshll.u32 [#allocation2], 4
      %s15 = int_to_ptr.vmem [resolvable:$true] %s14
      %17 = dma.hbm_to_vmem [thread:$0]  %s0, 256, %s15, [#allocation3]
    $region5: #{tpu_custom_call.1} parent=1 // pred_fallthru
      _
    // Predicated region
    $region6: #{tpu_custom_call.1} parent=1 // pred_check
      _
    $region7: #{tpu_custom_call.1} parent=1 // pred_check_branch
      %19 = sbr.rel (0) target = $region9
    $region8: #{tpu_custom_call.1} parent=1 // pred_region
      %20 = dma.done [#allocation3], 256
    $region9: #{tpu_custom_call.1} parent=1 // pred_fallthru
      _
    %v21 = vld [vmem:[#allocation2] sm:$0xff]
    %v22 = vld [vmem:[#allocation2 + $0x8] sm:$0xff]
    %v25 = vcombine.high %v21, %v21
    %v27 = vunpack.c.l.s4 1983009808
    %v28 = vunpack.c.0.s8 %v27
    %v29 = vlaneseq
    %v30 = vshrl.u32 %v29, 7
    %v31 = vsub.s32 %v28, %v30
    %v32 = vrot.slane %v21, %v31
    %v34 = vunpack.c.l.s4 1983009808
    %v35 = vunpack.c.0.s8 %v34
    %v36 = vlaneseq
    %v37 = vshrl.u32 %v36, 7
    %v38 = vsub.s32 %v35, %v37
    %v39 = vrot.slane %v25, %v38
    %v40 = vcombine.high %v32, %v32
    %v41 = vcombine.high %v39, %v39
    %v42 = vcombine.high %v22, %v22
    %v44 = vunpack.c.l.s4 1983009808
    %v45 = vunpack.c.0.s8 %v44
    %v46 = vlaneseq
    %v47 = vshrl.u32 %v46, 7
    %v48 = vsub.s32 %v45, %v47
    %v49 = vrot.slane %v22, %v48
    %v51 = vunpack.c.l.s4 1983009808
    %v52 = vunpack.c.0.s8 %v51
    %v53 = vlaneseq
    %v54 = vshrl.u32 %v53, 7
    %v55 = vsub.s32 %v52, %v54
    %v56 = vrot.slane %v42, %v55
    %v57 = vcombine.high %v49, %v49
    %v58 = vcombine.high %v56, %v56
    %vm67 = vcmask 1041408
    %v68 = vsel %vm67, %v32, 0.0
    %v69 = vsel %vm67, %v40, 0.0
    %v70 = vadd.f32 %v68, %v69
    %v71 = vsel %vm67, %v39, 0.0
    %v72 = vadd.f32 %v70, %v71
    %v73 = vsel %vm67, %v41, 0.0
    %v74 = vadd.f32 %v72, %v73
    %v75 = vsel %vm67, %v49, 0.0
    %v76 = vadd.f32 %v74, %v75
    %v77 = vsel %vm67, %v57, 0.0
    %v78 = vadd.f32 %v76, %v77
    %v79 = vsel %vm67, %v56, 0.0
    %v80 = vadd.f32 %v78, %v79
    %v81 = vsel %vm67, %v58, 0.0
    %v82 = vadd.f32 %v80, %v81
    %83 = vadd.xlane.f32.xlu0 %v82
    %v84 = vpop.xlane.xlu0 %83
    %v85 = vrot.slane %v84, 4
    %v86 = vadd.f32 %v84, %v85
    %v87 = vrot.slane %v86, 2
    %v88 = vadd.f32 %v86, %v87
    %v89 = vrot.slane %v88, 1
    %v90 = vadd.f32 %v88, %v89
    %s91 = vtos %v90
    %v92 = vrcp.pop 2048.0
    %s93 = vtos %v92
    %s94 = smul.f32 %s91, %s93
    %v95 = vstv %s94
    %v96 = vsub.f32 %v21, %v95
    %v97 = vsub.f32 %v22, %v95
    %98 = vst [vmem:[#allocation5] sm:$0xff] %v96
    %99 = vst [vmem:[#allocation5 + $0x8] sm:$0xff] %v97
    // Predicated region
    $region10: #{tpu_custom_call.1} parent=1 // pred_check
      _
    $region11: #{tpu_custom_call.1} parent=1 // pred_check_branch
      %101 = sbr.rel (0) target = $region13
    $region12: #{tpu_custom_call.1} parent=1 // pred_region
      %s103 = ssub.s32 256, 256
      %104 = vsyncadd [#allocation4], %s103
      %s106 = sshll.u32 [#allocation5], 4
      %s107 = int_to_ptr.vmem [resolvable:$true] %s106
      %109 = dma.vmem_to_hbm [thread:$0]  %s107, 256, %s1, [#allocation4]
    $region13: #{tpu_custom_call.1} parent=1 // pred_fallthru
      _
    // Predicated region
    $region14: #{tpu_custom_call.1} parent=1 // pred_check
      _
    $region15: #{tpu_custom_call.1} parent=1 // pred_check_branch
      %111 = sbr.rel (0) target = $region17
    $region16: #{tpu_custom_call.1} parent=1 // pred_region
      %112 = dma.done [#allocation4], 256
    $region17: #{tpu_custom_call.1} parent=1 // pred_fallthru
      _
    %113 = vsyncpa [#allocation3], 1
    %114 = vsyncpa [#allocation4], 1

</llo_original>
